<compile_context>
chip_gen: v7x
topology: tpu7x:2x2x1
jax: 0.10.0
libtpu: 0.0.40
codegen_flags: <defaults>
</compile_context>

<pallas_src>
import jax
import jax.numpy as jnp
from jax.experimental import pallas as pl
from jax.experimental.pallas import tpu as pltpu

# ---- model dims (consistent with MLP(n_pixels, n_classes)) ----
N_PIXELS = 64          # e.g. 8x8 single-channel images
N_CLASSES = 10
HIDDENS = (400, 200, 100, 50)
MAX_TILE_B = 2048      # batch rows per grid step (few-step coverage of the batch)


def _round_up(x, m):
    return (x + m - 1) // m * m


def mlp_kernel(x_ref,
               w1_ref, b1_ref,
               w2_ref, b2_ref,
               w3_ref, b3_ref,
               w4_ref, b4_ref,
               w5_ref, b5_ref,
               out_ref):
    # MXU operands (x, weights, inter-layer activations) are bf16; all VPU/EUP
    # work (bias add, ReLU, log-softmax) stays in f32 on the f32 accumulators.
    def dense(h_bf16, w_ref, b_ref):
        acc = jnp.dot(h_bf16, w_ref[...], preferred_element_type=jnp.float32)
        return acc + b_ref[...]

    # Cast inside the kernel: hides under DMA/MXU slack, avoids a wrapper-side
    # cast that would cost an extra HBM pass over the activations.
    h = x_ref[...].astype(jnp.bfloat16)                  # (TILE_B, N_PIXELS)
    h = jnp.maximum(dense(h, w1_ref, b1_ref), 0.0).astype(jnp.bfloat16)
    h = jnp.maximum(dense(h, w2_ref, b2_ref), 0.0).astype(jnp.bfloat16)
    h = jnp.maximum(dense(h, w3_ref, b3_ref), 0.0).astype(jnp.bfloat16)
    h = jnp.maximum(dense(h, w4_ref, b4_ref), 0.0).astype(jnp.bfloat16)
    logits = dense(h, w5_ref, b5_ref)                    # f32 (TILE_B, N_CLASSES)

    # Numerically stable LogSoftmax along axis=1 (classes).
    m = jnp.max(logits, axis=1, keepdims=True)
    shifted = logits - m
    lse = jnp.log(jnp.sum(jnp.exp(shifted), axis=1, keepdims=True))
    out_ref[...] = shifted - lse


def init_params(key, n_pixels, n_classes):
    """Deterministic init mimicking torch.nn.Linear's U(-1/sqrt(fan_in), ...)."""
    dims = (n_pixels,) + HIDDENS + (n_classes,)
    params = []
    for i in range(len(dims) - 1):
        fan_in, fan_out = dims[i], dims[i + 1]
        key, kw, kb = jax.random.split(key, 3)
        bound = 1.0 / jnp.sqrt(jnp.float32(fan_in))
        w = jax.random.uniform(kw, (fan_in, fan_out), jnp.float32, -bound, bound)
        b = jax.random.uniform(kb, (1, fan_out), jnp.float32, -bound, bound)
        params.append((w, b))
    return params


def prepare_params(params):
    """Cast parameters ONCE: bf16 MXU weights, f32 biases. Cache & reuse."""
    flat = []
    for (w, b) in params:
        flat.append(w.astype(jnp.bfloat16))
        flat.append(b.astype(jnp.float32))
    return tuple(flat)


def mlp_forward(x, flat_params, max_tile_b=MAX_TILE_B):
    """x: (B, C, H, W) or (B, n_pixels); flat_params from prepare_params().
    Returns (B, n_classes) log-probabilities."""
    x = x.reshape(-1, N_PIXELS)          # native dtype; no wrapper-side cast
    B = x.shape[0]

    # Cover the batch in as few, balanced grid steps as possible; even grid
    # length when multi-step so v7x's two TensorCores stay balanced.
    num_steps = pl.cdiv(B, max_tile_b)
    if num_steps > 1 and num_steps % 2 == 1:
        num_steps += 1
    tile_b = _round_up(pl.cdiv(B, num_steps), 8)   # sublane-aligned
    B_pad = num_steps * tile_b
    if B_pad != B:
        x = jnp.pad(x, ((0, B_pad - B), (0, 0)))

    # x block is streamed (default double-buffered); weights/biases have a
    # constant index_map and a single buffer -> DMA'd once, VMEM-resident.
    in_specs = [pl.BlockSpec((tile_b, N_PIXELS), lambda i: (i, 0))]
    for p in flat_params:
        in_specs.append(pl.BlockSpec(p.shape, lambda i: (0, 0),
                                     pipeline_mode=pl.Buffered(1)))

    out = pl.pallas_call(
        mlp_kernel,
        out_shape=jax.ShapeDtypeStruct((B_pad, N_CLASSES), jnp.float32),
        grid=(num_steps,),
        in_specs=in_specs,
        out_specs=pl.BlockSpec((tile_b, N_CLASSES), lambda i: (i, 0)),
        compiler_params=pltpu.CompilerParams(
            dimension_semantics=("parallel",),
            vmem_limit_bytes=32 << 20),
    )(x, *flat_params)
    return out[:B]


def mlp_forward_ref(x, params):
    """Pure-JAX reference mirroring the kernel's mixed-precision path."""
    h = x.reshape(-1, N_PIXELS).astype(jnp.bfloat16)
    for i, (w, b) in enumerate(params):
        h = jnp.dot(h, w.astype(jnp.bfloat16),
                    preferred_element_type=jnp.float32) + b.astype(jnp.float32)
        if i < len(params) - 1:
            h = jnp.maximum(h, 0.0).astype(jnp.bfloat16)
    return jax.nn.log_softmax(h, axis=1)


if __name__ == "__main__":
    key = jax.random.PRNGKey(0)
    k_x, k_p = jax.random.split(key)

    # Small NCHW input consistent with n_pixels = 1*8*8 = 64.
    x = jax.random.normal(k_x, (8, 1, 8, 8), dtype=jnp.float32)
    params = init_params(k_p, N_PIXELS, N_CLASSES)
    flat_params = prepare_params(params)   # cast once, reuse across calls

    out = mlp_forward(x, flat_params)
    out = jax.block_until_ready(out)

    ref = mlp_forward_ref(x, params)
    assert out.shape == (8, N_CLASSES)
    assert jnp.allclose(out, ref, atol=1e-4, rtol=1e-4), "mismatch vs reference"

    print("KERNEL_OK")
</pallas_src>

<mosaic_0001>
module attributes {stable_mosaic.version = 11 : i64} {
  func.func @mlp_kernel(%arg0: i32, %arg1: memref<8x64xf32, #tpu.memory_space<vmem>>, %arg2: memref<64x400xbf16, #tpu.memory_space<vmem>>, %arg3: memref<1x400xf32, #tpu.memory_space<vmem>>, %arg4: memref<400x200xbf16, #tpu.memory_space<vmem>>, %arg5: memref<1x200xf32, #tpu.memory_space<vmem>>, %arg6: memref<200x100xbf16, #tpu.memory_space<vmem>>, %arg7: memref<1x100xf32, #tpu.memory_space<vmem>>, %arg8: memref<100x50xbf16, #tpu.memory_space<vmem>>, %arg9: memref<1x50xf32, #tpu.memory_space<vmem>>, %arg10: memref<50x10xbf16, #tpu.memory_space<vmem>>, %arg11: memref<1x10xf32, #tpu.memory_space<vmem>>, %arg12: memref<8x10xf32, #tpu.memory_space<vmem>>) attributes {dimension_semantics = [#tpu.dimension_semantics<parallel>], iteration_bounds = array<i64: 1>, scalar_prefetch = 0 : i64, scratch_operands = 0 : i64, tpu.core_type = #tpu.core_type<tc>, window_params = [{transform_indices = @transform_0, window_bounds = array<i64: 8, 64>}, {pipeline_mode = #tpu.pipeline_mode<synchronous>, transform_indices = @transform_1, window_bounds = array<i64: 64, 400>}, {pipeline_mode = #tpu.pipeline_mode<synchronous>, transform_indices = @transform_2, window_bounds = array<i64: 1, 400>}, {pipeline_mode = #tpu.pipeline_mode<synchronous>, transform_indices = @transform_3, window_bounds = array<i64: 400, 200>}, {pipeline_mode = #tpu.pipeline_mode<synchronous>, transform_indices = @transform_4, window_bounds = array<i64: 1, 200>}, {pipeline_mode = #tpu.pipeline_mode<synchronous>, transform_indices = @transform_5, window_bounds = array<i64: 200, 100>}, {pipeline_mode = #tpu.pipeline_mode<synchronous>, transform_indices = @transform_6, window_bounds = array<i64: 1, 100>}, {pipeline_mode = #tpu.pipeline_mode<synchronous>, transform_indices = @transform_7, window_bounds = array<i64: 100, 50>}, {pipeline_mode = #tpu.pipeline_mode<synchronous>, transform_indices = @transform_8, window_bounds = array<i64: 1, 50>}, {pipeline_mode = #tpu.pipeline_mode<synchronous>, transform_indices = @transform_9, window_bounds = array<i64: 50, 10>}, {pipeline_mode = #tpu.pipeline_mode<synchronous>, transform_indices = @transform_10, window_bounds = array<i64: 1, 10>}, {transform_indices = @transform_11, window_bounds = array<i64: 8, 10>}]} {
    %c0 = arith.constant 0 : index
    %c0_0 = arith.constant 0 : index
    %0 = vector.load %arg1[%c0, %c0_0] : memref<8x64xf32, #tpu.memory_space<vmem>>, vector<8x64xf32>
    %1 = arith.truncf %0 : vector<8x64xf32> to vector<8x64xbf16>
    %c0_1 = arith.constant 0 : index
    %c0_2 = arith.constant 0 : index
    %2 = vector.load %arg2[%c0_1, %c0_2] : memref<64x400xbf16, #tpu.memory_space<vmem>>, vector<64x400xbf16>
    %cst = arith.constant dense<0.000000e+00> : vector<8x400xf32>
    %3 = tpu.matmul %1, %2, %cst {dimension_numbers = #tpu.dot_dimension_numbers<[1], [0], [0], [1], [0, 0, 1, 1], [], []>} : vector<8x64xbf16>, vector<64x400xbf16>, vector<8x400xf32> -> vector<8x400xf32>
    %c0_3 = arith.constant 0 : index
    %c0_4 = arith.constant 0 : index
    %4 = vector.load %arg3[%c0_3, %c0_4] : memref<1x400xf32, #tpu.memory_space<vmem>>, vector<1x400xf32>
    %5 = vector.broadcast %4 : vector<1x400xf32> to vector<8x400xf32>
    %6 = arith.addf %3, %5 : vector<8x400xf32>
    %cst_5 = arith.constant 0.000000e+00 : f32
    %7 = vector.broadcast %cst_5 : f32 to vector<8x400xf32>
    %8 = arith.maximumf %6, %7 : vector<8x400xf32>
    %9 = arith.truncf %8 : vector<8x400xf32> to vector<8x400xbf16>
    %c0_6 = arith.constant 0 : index
    %c0_7 = arith.constant 0 : index
    %10 = vector.load %arg4[%c0_6, %c0_7] : memref<400x200xbf16, #tpu.memory_space<vmem>>, vector<400x200xbf16>
    %cst_8 = arith.constant dense<0.000000e+00> : vector<8x200xf32>
    %11 = tpu.matmul %9, %10, %cst_8 {dimension_numbers = #tpu.dot_dimension_numbers<[1], [0], [0], [1], [0, 0, 1, 1], [], []>} : vector<8x400xbf16>, vector<400x200xbf16>, vector<8x200xf32> -> vector<8x200xf32>
    %c0_9 = arith.constant 0 : index
    %c0_10 = arith.constant 0 : index
    %12 = vector.load %arg5[%c0_9, %c0_10] : memref<1x200xf32, #tpu.memory_space<vmem>>, vector<1x200xf32>
    %13 = vector.broadcast %12 : vector<1x200xf32> to vector<8x200xf32>
    %14 = arith.addf %11, %13 : vector<8x200xf32>
    %cst_11 = arith.constant 0.000000e+00 : f32
    %15 = vector.broadcast %cst_11 : f32 to vector<8x200xf32>
    %16 = arith.maximumf %14, %15 : vector<8x200xf32>
    %17 = arith.truncf %16 : vector<8x200xf32> to vector<8x200xbf16>
    %c0_12 = arith.constant 0 : index
    %c0_13 = arith.constant 0 : index
    %18 = vector.load %arg6[%c0_12, %c0_13] : memref<200x100xbf16, #tpu.memory_space<vmem>>, vector<200x100xbf16>
    %cst_14 = arith.constant dense<0.000000e+00> : vector<8x100xf32>
    %19 = tpu.matmul %17, %18, %cst_14 {dimension_numbers = #tpu.dot_dimension_numbers<[1], [0], [0], [1], [0, 0, 1, 1], [], []>} : vector<8x200xbf16>, vector<200x100xbf16>, vector<8x100xf32> -> vector<8x100xf32>
    %c0_15 = arith.constant 0 : index
    %c0_16 = arith.constant 0 : index
    %20 = vector.load %arg7[%c0_15, %c0_16] : memref<1x100xf32, #tpu.memory_space<vmem>>, vector<1x100xf32>
    %21 = vector.broadcast %20 : vector<1x100xf32> to vector<8x100xf32>
    %22 = arith.addf %19, %21 : vector<8x100xf32>
    %cst_17 = arith.constant 0.000000e+00 : f32
    %23 = vector.broadcast %cst_17 : f32 to vector<8x100xf32>
    %24 = arith.maximumf %22, %23 : vector<8x100xf32>
    %25 = arith.truncf %24 : vector<8x100xf32> to vector<8x100xbf16>
    %c0_18 = arith.constant 0 : index
    %c0_19 = arith.constant 0 : index
    %26 = vector.load %arg8[%c0_18, %c0_19] : memref<100x50xbf16, #tpu.memory_space<vmem>>, vector<100x50xbf16>
    %cst_20 = arith.constant dense<0.000000e+00> : vector<8x50xf32>
    %27 = tpu.matmul %25, %26, %cst_20 {dimension_numbers = #tpu.dot_dimension_numbers<[1], [0], [0], [1], [0, 0, 1, 1], [], []>} : vector<8x100xbf16>, vector<100x50xbf16>, vector<8x50xf32> -> vector<8x50xf32>
    %c0_21 = arith.constant 0 : index
    %c0_22 = arith.constant 0 : index
    %28 = vector.load %arg9[%c0_21, %c0_22] : memref<1x50xf32, #tpu.memory_space<vmem>>, vector<1x50xf32>
    %29 = vector.broadcast %28 : vector<1x50xf32> to vector<8x50xf32>
    %30 = arith.addf %27, %29 : vector<8x50xf32>
    %cst_23 = arith.constant 0.000000e+00 : f32
    %31 = vector.broadcast %cst_23 : f32 to vector<8x50xf32>
    %32 = arith.maximumf %30, %31 : vector<8x50xf32>
    %33 = arith.truncf %32 : vector<8x50xf32> to vector<8x50xbf16>
    %c0_24 = arith.constant 0 : index
    %c0_25 = arith.constant 0 : index
    %34 = vector.load %arg10[%c0_24, %c0_25] : memref<50x10xbf16, #tpu.memory_space<vmem>>, vector<50x10xbf16>
    %cst_26 = arith.constant dense<0.000000e+00> : vector<8x10xf32>
    %35 = tpu.matmul %33, %34, %cst_26 {dimension_numbers = #tpu.dot_dimension_numbers<[1], [0], [0], [1], [0, 0, 1, 1], [], []>} : vector<8x50xbf16>, vector<50x10xbf16>, vector<8x10xf32> -> vector<8x10xf32>
    %c0_27 = arith.constant 0 : index
    %c0_28 = arith.constant 0 : index
    %36 = vector.load %arg11[%c0_27, %c0_28] : memref<1x10xf32, #tpu.memory_space<vmem>>, vector<1x10xf32>
    %37 = vector.broadcast %36 : vector<1x10xf32> to vector<8x10xf32>
    %38 = arith.addf %35, %37 : vector<8x10xf32>
    %cst_29 = arith.constant dense<0xFF800000> : vector<8xf32>
    %39 = vector.multi_reduction <maximumf>, %38, %cst_29 [1] : vector<8x10xf32> to vector<8xf32>
    %40 = vector.shape_cast %39 : vector<8xf32> to vector<8x1xf32>
    %41 = vector.broadcast %40 : vector<8x1xf32> to vector<8x10xf32>
    %42 = arith.subf %38, %41 : vector<8x10xf32>
    %43 = math.exp %42 : vector<8x10xf32>
    %cst_30 = arith.constant dense<0.000000e+00> : vector<8xf32>
    %44 = vector.multi_reduction <add>, %43, %cst_30 [1] : vector<8x10xf32> to vector<8xf32>
    %45 = vector.shape_cast %44 : vector<8xf32> to vector<8x1xf32>
    %46 = math.log %45 : vector<8x1xf32>
    %47 = vector.broadcast %46 : vector<8x1xf32> to vector<8x10xf32>
    %48 = arith.subf %42, %47 : vector<8x10xf32>
    %c0_31 = arith.constant 0 : index
    %c0_32 = arith.constant 0 : index
    %49 = vector.load %arg12[%c0_31, %c0_32] : memref<8x10xf32, #tpu.memory_space<vmem>>, vector<8x10xf32>
    tpu.vector_store %arg12[%c0_31, %c0_32], %48 {strides = array<i32>} : memref<8x10xf32, #tpu.memory_space<vmem>>, vector<8x10xf32>,
    return
  }
  func.func @transform_0(%arg0: i32) -> (i32, i32) {
    %c0_i32 = arith.constant 0 : i32
    %c0_i32_0 = arith.constant 0 : i32
    return %arg0, %c0_i32 : i32, i32
  }
  func.func @transform_1(%arg0: i32) -> (i32, i32) {
    %c0_i32 = arith.constant 0 : i32
    %c0_i32_0 = arith.constant 0 : i32
    %c0_i32_1 = arith.constant 0 : i32
    return %c0_i32, %c0_i32_0 : i32, i32
  }
  func.func @transform_2(%arg0: i32) -> (i32, i32) {
    %c0_i32 = arith.constant 0 : i32
    %c0_i32_0 = arith.constant 0 : i32
    %c0_i32_1 = arith.constant 0 : i32
    return %c0_i32, %c0_i32_0 : i32, i32
  }
  func.func @transform_3(%arg0: i32) -> (i32, i32) {
    %c0_i32 = arith.constant 0 : i32
    %c0_i32_0 = arith.constant 0 : i32
    %c0_i32_1 = arith.constant 0 : i32
    return %c0_i32, %c0_i32_0 : i32, i32
  }
  func.func @transform_4(%arg0: i32) -> (i32, i32) {
    %c0_i32 = arith.constant 0 : i32
    %c0_i32_0 = arith.constant 0 : i32
    %c0_i32_1 = arith.constant 0 : i32
    return %c0_i32, %c0_i32_0 : i32, i32
  }
  func.func @transform_5(%arg0: i32) -> (i32, i32) {
    %c0_i32 = arith.constant 0 : i32
    %c0_i32_0 = arith.constant 0 : i32
    %c0_i32_1 = arith.constant 0 : i32
    return %c0_i32, %c0_i32_0 : i32, i32
  }
  func.func @transform_6(%arg0: i32) -> (i32, i32) {
    %c0_i32 = arith.constant 0 : i32
    %c0_i32_0 = arith.constant 0 : i32
    %c0_i32_1 = arith.constant 0 : i32
    return %c0_i32, %c0_i32_0 : i32, i32
  }
  func.func @transform_7(%arg0: i32) -> (i32, i32) {
    %c0_i32 = arith.constant 0 : i32
    %c0_i32_0 = arith.constant 0 : i32
    %c0_i32_1 = arith.constant 0 : i32
    return %c0_i32, %c0_i32_0 : i32, i32
  }
  func.func @transform_8(%arg0: i32) -> (i32, i32) {
    %c0_i32 = arith.constant 0 : i32
    %c0_i32_0 = arith.constant 0 : i32
    %c0_i32_1 = arith.constant 0 : i32
    return %c0_i32, %c0_i32_0 : i32, i32
  }
  func.func @transform_9(%arg0: i32) -> (i32, i32) {
    %c0_i32 = arith.constant 0 : i32
    %c0_i32_0 = arith.constant 0 : i32
    %c0_i32_1 = arith.constant 0 : i32
    return %c0_i32, %c0_i32_0 : i32, i32
  }
  func.func @transform_10(%arg0: i32) -> (i32, i32) {
    %c0_i32 = arith.constant 0 : i32
    %c0_i32_0 = arith.constant 0 : i32
    %c0_i32_1 = arith.constant 0 : i32
    return %c0_i32, %c0_i32_0 : i32, i32
  }
  func.func @transform_11(%arg0: i32) -> (i32, i32) {
    %c0_i32 = arith.constant 0 : i32
    %c0_i32_0 = arith.constant 0 : i32
    return %arg0, %c0_i32 : i32, i32
  }
}

</mosaic_0001>

<llo_original>
// kernel: tpu_custom_call.1
$region0: #{tpu_custom_call.1}
  #allocation0 [shape = 'u32[]', space=smem, size = 0x4, offset = 0x4, fixed_abs, tag = 'smem constant byte address 0x4 - core index']
  #allocation1 [shape = 'u32[144,128]{1,0:T(1,128)}', space=vmem, size = 0x12000, scoped, tag = 'internal scratch']
  %s0 = inlined_call_operand.vmem [shape: f32[8,64], index: 0, kind: input, shape index: {}]
  %s1 = inlined_call_operand.hbm [shape: bf16[64,400], index: 1, kind: input, shape index: {}]
  %s2 = inlined_call_operand.hbm [shape: f32[1,400], index: 2, kind: input, shape index: {}]
  %s3 = inlined_call_operand.hbm [shape: bf16[400,200], index: 3, kind: input, shape index: {}]
  %s4 = inlined_call_operand.vmem [shape: f32[1,200], index: 4, kind: input, shape index: {}]
  %s5 = inlined_call_operand.vmem [shape: bf16[200,100], index: 5, kind: input, shape index: {}]
  %s6 = inlined_call_operand.hbm [shape: f32[1,100], index: 6, kind: input, shape index: {}]
  %s7 = inlined_call_operand.vmem [shape: bf16[100,50], index: 7, kind: input, shape index: {}]
  %s8 = inlined_call_operand.hbm [shape: f32[1,50], index: 8, kind: input, shape index: {}]
  %s9 = inlined_call_operand.vmem [shape: bf16[50,10], index: 9, kind: input, shape index: {}]
  %s10 = inlined_call_operand.vmem [shape: f32[1,10], index: 10, kind: input, shape index: {}]
  %s11 = inlined_call_operand.hbm [shape: f32[8,10], index: 11, kind: output, shape index: {}]
  %s12 = sld [smem:[#allocation0]]
  $region74: #{tpu_custom_call.1} parent=0
    _
  %s14 = ssub.s32 1, %s12
  %s15 = scalar_select 0, %s14, %s12
  $region1: #{tpu_custom_call.1} parent=0
    #allocation2 [shape = 'u8[65536]{0}', space=vmem, size = 0x10000, scoped, tag = 'input window, operand 1, single buffered']
    #allocation3 [shape = 's32[1]{0}', space=sflag, size = 0x4, scoped, tag = 'scoped memory for tpu_custom_call.1']
    #allocation4 [shape = 's32[1]{0}', space=sflag, size = 0x4, scoped, tag = 'scoped memory for tpu_custom_call.1']
    #allocation5 [shape = 'u8[2048]{0}', space=vmem, size = 0x800, scoped, tag = 'input window, operand 2, single buffered']
    #allocation6 [shape = 's32[1]{0}', space=sflag, size = 0x4, scoped, tag = 'scoped memory for tpu_custom_call.1']
    #allocation7 [shape = 'u8[204800]{0}', space=vmem, size = 0x32000, scoped, tag = 'input window, operand 3, single buffered']
    #allocation8 [shape = 'u8[512]{0}', space=vmem, size = 0x400, scoped, tag = 'input window, operand 6, single buffered']
    #allocation9 [shape = 's32[1]{0}', space=sflag, size = 0x4, scoped, tag = 'scoped memory for tpu_custom_call.1']
    #allocation10 [shape = 'u8[512]{0}', space=vmem, size = 0x400, scoped, tag = 'input window, operand 8, single buffered']
    #allocation11 [shape = 'u8[4096]{0}', space=vmem, size = 0x1000, scoped, tag = 'output window, operand 0, single buffered']
    %16 = vsyncpa [#allocation3], 0
    %17 = vsyncpa [#allocation6], 0
    %18 = vsyncpa [#allocation9], 0
    %19 = vsyncpa [#allocation4], 0
    // Predicated region
    $region2: #{tpu_custom_call.1} parent=1 // pred_check
      _
    $region3: #{tpu_custom_call.1} parent=1 // pred_check_branch
      %21 = sbr.rel (0) target = $region5
    $region4: #{tpu_custom_call.1} parent=1 // pred_region
      _
    $region5: #{tpu_custom_call.1} parent=1 // pred_fallthru
      _
    // Predicated region
    $region6: #{tpu_custom_call.1} parent=1 // pred_check
      _
    $region7: #{tpu_custom_call.1} parent=1 // pred_check_branch
      %23 = sbr.rel (0) target = $region9
    $region8: #{tpu_custom_call.1} parent=1 // pred_region
      %s25 = ssub.s32 2048, 2048
      %26 = vsyncadd [#allocation3], %s25
      %s27 = sshll.u32 [#allocation2], 4
      %s28 = int_to_ptr.vmem [resolvable:$true] %s27
      %33 = dma.hbm_to_vmem [thread:$0]  %s1, 2048, %s28, [#allocation3], 256, 256, 16
    $region9: #{tpu_custom_call.1} parent=1 // pred_fallthru
      _
    // Predicated region
    $region10: #{tpu_custom_call.1} parent=1 // pred_check
      _
    $region11: #{tpu_custom_call.1} parent=1 // pred_check_branch
      %35 = sbr.rel (0) target = $region13
    $region12: #{tpu_custom_call.1} parent=1 // pred_region
      %s37 = ssub.s32 64, 64
      %38 = vsyncadd [#allocation6], %s37
      %s40 = sshll.u32 [#allocation5], 4
      %s41 = int_to_ptr.vmem [resolvable:$true] %s40
      %43 = dma.hbm_to_vmem [thread:$0]  %s2, 64, %s41, [#allocation6]
    $region13: #{tpu_custom_call.1} parent=1 // pred_fallthru
      _
    // Predicated region
    $region14: #{tpu_custom_call.1} parent=1 // pred_check
      _
    $region15: #{tpu_custom_call.1} parent=1 // pred_check_branch
      %45 = sbr.rel (0) target = $region17
    $region16: #{tpu_custom_call.1} parent=1 // pred_region
      %s47 = ssub.s32 6400, 6400
      %48 = vsyncadd [#allocation6], %s47
      %s49 = sshll.u32 [#allocation7], 4
      %s50 = int_to_ptr.vmem [resolvable:$true] %s49
      %55 = dma.hbm_to_vmem [thread:$0]  %s3, 6400, %s50, [#allocation6], 128, 128, 8
    $region17: #{tpu_custom_call.1} parent=1 // pred_fallthru
      _
    // Predicated region
    $region18: #{tpu_custom_call.1} parent=1 // pred_check
      _
    $region19: #{tpu_custom_call.1} parent=1 // pred_check_branch
      %57 = sbr.rel (0) target = $region21
    $region20: #{tpu_custom_call.1} parent=1 // pred_region
      _
    $region21: #{tpu_custom_call.1} parent=1 // pred_fallthru
      _
    // Predicated region
    $region22: #{tpu_custom_call.1} parent=1 // pred_check
      _
    $region23: #{tpu_custom_call.1} parent=1 // pred_check_branch
      %59 = sbr.rel (0) target = $region25
    $region24: #{tpu_custom_call.1} parent=1 // pred_region
      _
    $region25: #{tpu_custom_call.1} parent=1 // pred_fallthru
      _
    // Predicated region
    $region26: #{tpu_custom_call.1} parent=1 // pred_check
      _
    $region27: #{tpu_custom_call.1} parent=1 // pred_check_branch
      %61 = sbr.rel (0) target = $region29
    $region28: #{tpu_custom_call.1} parent=1 // pred_region
      %s63 = ssub.s32 16, 16
      %64 = vsyncadd [#allocation9], %s63
      %s66 = sshll.u32 [#allocation8], 4
      %s67 = int_to_ptr.vmem [resolvable:$true] %s66
      %69 = dma.hbm_to_vmem [thread:$0]  %s6, 16, %s67, [#allocation9]
    $region29: #{tpu_custom_call.1} parent=1 // pred_fallthru
      _
    // Predicated region
    $region30: #{tpu_custom_call.1} parent=1 // pred_check
      _
    $region31: #{tpu_custom_call.1} parent=1 // pred_check_branch
      %71 = sbr.rel (0) target = $region33
    $region32: #{tpu_custom_call.1} parent=1 // pred_region
      _
    $region33: #{tpu_custom_call.1} parent=1 // pred_fallthru
      _
    // Predicated region
    $region34: #{tpu_custom_call.1} parent=1 // pred_check
      _
    $region35: #{tpu_custom_call.1} parent=1 // pred_check_branch
      %73 = sbr.rel (0) target = $region37
    $region36: #{tpu_custom_call.1} parent=1 // pred_region
      %s75 = ssub.s32 16, 16
      %76 = vsyncadd [#allocation9], %s75
      %s78 = sshll.u32 [#allocation10], 4
      %s79 = int_to_ptr.vmem [resolvable:$true] %s78
      %81 = dma.hbm_to_vmem [thread:$0]  %s8, 16, %s79, [#allocation9]
    $region37: #{tpu_custom_call.1} parent=1 // pred_fallthru
      _
    // Predicated region
    $region38: #{tpu_custom_call.1} parent=1 // pred_check
      _
    $region39: #{tpu_custom_call.1} parent=1 // pred_check_branch
      %83 = sbr.rel (0) target = $region41
    $region40: #{tpu_custom_call.1} parent=1 // pred_region
      _
    $region41: #{tpu_custom_call.1} parent=1 // pred_fallthru
      _
    // Predicated region
    $region42: #{tpu_custom_call.1} parent=1 // pred_check
      _
    $region43: #{tpu_custom_call.1} parent=1 // pred_check_branch
      %85 = sbr.rel (0) target = $region45
    $region44: #{tpu_custom_call.1} parent=1 // pred_region
      _
    $region45: #{tpu_custom_call.1} parent=1 // pred_fallthru
      _
    // Predicated region
    $region46: #{tpu_custom_call.1} parent=1 // pred_check
      _
    $region47: #{tpu_custom_call.1} parent=1 // pred_check_branch
      %87 = sbr.rel (0) target = $region49
    $region48: #{tpu_custom_call.1} parent=1 // pred_region
      %88 = dma.done [#allocation3], 2048
    $region49: #{tpu_custom_call.1} parent=1 // pred_fallthru
      _
    // Predicated region
    $region50: #{tpu_custom_call.1} parent=1 // pred_check
      _
    $region51: #{tpu_custom_call.1} parent=1 // pred_check_branch
      %90 = sbr.rel (0) target = $region53
    $region52: #{tpu_custom_call.1} parent=1 // pred_region
      %91 = dma.done [#allocation6], 64
    $region53: #{tpu_custom_call.1} parent=1 // pred_fallthru
      _
    // Predicated region
    $region54: #{tpu_custom_call.1} parent=1 // pred_check
      _
    $region55: #{tpu_custom_call.1} parent=1 // pred_check_branch
      %93 = sbr.rel (0) target = $region57
    $region56: #{tpu_custom_call.1} parent=1 // pred_region
      %94 = dma.done [#allocation6], 6400
    $region57: #{tpu_custom_call.1} parent=1 // pred_fallthru
      _
    // Predicated region
    $region58: #{tpu_custom_call.1} parent=1 // pred_check
      _
    $region59: #{tpu_custom_call.1} parent=1 // pred_check_branch
      %96 = sbr.rel (0) target = $region61
    $region60: #{tpu_custom_call.1} parent=1 // pred_region
      %97 = dma.done [#allocation9], 16
    $region61: #{tpu_custom_call.1} parent=1 // pred_fallthru
      _
    // Predicated region
    $region62: #{tpu_custom_call.1} parent=1 // pred_check
      _
    $region63: #{tpu_custom_call.1} parent=1 // pred_check_branch
      %99 = sbr.rel (0) target = $region65
    $region64: #{tpu_custom_call.1} parent=1 // pred_region
      %100 = dma.done [#allocation9], 16
    $region65: #{tpu_custom_call.1} parent=1 // pred_fallthru
      _
    %v102 = vld [vmem:[%s0] sm:$0xff]
    %v103 = vpack.c.bf16 %v102, %v102
    %v104 = vld [vmem:[#allocation2] sm:$0xff]
    %v105 = vld [vmem:[#allocation2 + $0x8] sm:$0xff]
    %v106 = vld [vmem:[#allocation2 + $0x10] sm:$0xff]
    %v107 = vld [vmem:[#allocation2 + $0x18] sm:$0xff]
    %v108 = vld [vmem:[#allocation2 + $0x20] sm:$0xff]
    %v109 = vld [vmem:[#allocation2 + $0x28] sm:$0xff]
    %v110 = vld [vmem:[#allocation2 + $0x30] sm:$0xff]
    %v111 = vld [vmem:[#allocation2 + $0x38] sm:$0xff]
    %v112 = vld [vmem:[#allocation2 + $0x40] sm:$0xff]
    %v113 = vld [vmem:[#allocation2 + $0x48] sm:$0xff]
    %v114 = vld [vmem:[#allocation2 + $0x50] sm:$0xff]
    %v115 = vld [vmem:[#allocation2 + $0x58] sm:$0xff]
    %v116 = vld [vmem:[#allocation2 + $0x60] sm:$0xff]
    %v117 = vld [vmem:[#allocation2 + $0x68] sm:$0xff]
    %v118 = vld [vmem:[#allocation2 + $0x70] sm:$0xff]
    %v119 = vld [vmem:[#allocation2 + $0x78] sm:$0xff]
    %v120 = vld [vmem:[#allocation5] sm:$0xf]
    %v122 = vlaneseq
    %v123 = vshrl.u32 %v122, 7
    %v124 = vsub.s32 0, %v123
    %v125 = vrot.slane %v120, %v124
    %v126 = vlaneseq
    %v127 = vshrl.u32 %v126, 7
    %v128 = vsub.s32 1, %v127
    %v129 = vrot.slane %v120, %v128
    %v130 = vlaneseq
    %v131 = vshrl.u32 %v130, 7
    %v132 = vsub.s32 2, %v131
    %v133 = vrot.slane %v120, %v132
    %v134 = vlaneseq
    %v135 = vshrl.u32 %v134, 7
    %v136 = vsub.s32 3, %v135
    %v137 = vrot.slane %v120, %v136
    %v158 = vunpack.c.l.b16 %v104
    %v159 = vunpack.c.h.b16 %v104
    %v160 = vunpack.c.l.b16 %v105
    %v161 = vunpack.c.h.b16 %v105
    %v162 = vunpack.c.l.b16 %v106
    %v163 = vunpack.c.h.b16 %v106
    %v164 = vunpack.c.l.b16 %v107
    %v165 = vunpack.c.h.b16 %v107
    %v166 = vunpack.c.l.b16 %v108
    %v167 = vunpack.c.h.b16 %v108
    %v168 = vunpack.c.l.b16 %v109
    %v169 = vunpack.c.h.b16 %v109
    %v170 = vunpack.c.l.b16 %v110
    %v171 = vunpack.c.h.b16 %v110
    %v172 = vunpack.c.l.b16 %v111
    %v173 = vunpack.c.h.b16 %v111
    %v174 = vunpack.c.l.b16 %v112
    %v175 = vunpack.c.h.b16 %v112
    %v176 = vunpack.c.l.b16 %v113
    %v177 = vunpack.c.h.b16 %v113
    %v178 = vunpack.c.l.b16 %v114
    %v179 = vunpack.c.h.b16 %v114
    %v180 = vunpack.c.l.b16 %v115
    %v181 = vunpack.c.h.b16 %v115
    %v182 = vunpack.c.l.b16 %v116
    %v183 = vunpack.c.h.b16 %v116
    %v184 = vunpack.c.l.b16 %v117
    %v185 = vunpack.c.h.b16 %v117
    %v186 = vunpack.c.l.b16 %v118
    %v187 = vunpack.c.h.b16 %v118
    %v188 = vunpack.c.l.b16 %v119
    %v189 = vunpack.c.h.b16 %v119
    %v190 = vpack.c.b16 %v162, %v158
    %v191 = vpack.c.b16 %v163, %v159
    %v192 = vpack.c.b16 %v164, %v160
    %v193 = vpack.c.b16 %v165, %v161
    %v194 = vpack.c.b16 %v170, %v166
    %v195 = vpack.c.b16 %v171, %v167
    %v196 = vpack.c.b16 %v172, %v168
    %v197 = vpack.c.b16 %v173, %v169
    %v198 = vpack.c.b16 %v178, %v174
    %v199 = vpack.c.b16 %v179, %v175
    %v200 = vpack.c.b16 %v180, %v176
    %v201 = vpack.c.b16 %v181, %v177
    %v202 = vpack.c.b16 %v186, %v182
    %v203 = vpack.c.b16 %v187, %v183
    %v204 = vpack.c.b16 %v188, %v184
    %v205 = vpack.c.b16 %v189, %v185
    %vm222 = vcmask 523264
    %v224 = vsel %vm222, %v103, 0
    %226 = vmatprep.subr.bf16.mxu0 %v191
    %227 = vmatpush1.bf16.msra.mxu0 %v190
    %228 = vmatprep.subr.bf16.mxu0 %v195
    %229 = vmatpush1.bf16.msra.mxu0 %v194
    %230 = vmatprep.subr.bf16.mxu0 %v199
    %231 = vmatpush1.bf16.msra.mxu0 %v198
    %232 = vmatprep.subr.bf16.mxu0 %v203
    %233 = vmatpush1.bf16.msra.mxu0 %v202
    %234 = vmatprep.subr.bf16.mxu0 0
    %235 = vmatpush1.bf16.msra.mxu0 0
    %236 = vmatprep.subr.bf16.mxu0 0
    %237 = vmatpush1.bf16.msra.mxu0 0
    %238 = vmatprep.subr.bf16.mxu0 0
    %239 = vmatpush1.bf16.msra.mxu0 0
    %240 = vmatprep.subr.bf16.mxu0 0
    %241 = vmatpush1.bf16.msra.mxu0 0
    %242 = vmatprep.subr.bf16.mxu0 0
    %243 = vmatpush1.bf16.msra.mxu0 0
    %244 = vmatprep.subr.bf16.mxu0 0
    %245 = vmatpush1.bf16.msra.mxu0 0
    %246 = vmatprep.subr.bf16.mxu0 0
    %247 = vmatpush1.bf16.msra.mxu0 0
    %248 = vmatprep.subr.bf16.mxu0 0
    %249 = vmatpush1.bf16.msra.mxu0 0
    %250 = vmatprep.subr.bf16.mxu0 0
    %251 = vmatpush1.bf16.msra.mxu0 0
    %252 = vmatprep.subr.bf16.mxu0 0
    %253 = vmatpush1.bf16.msra.mxu0 0
    %254 = vmatprep.subr.bf16.mxu0 0
    %255 = vmatpush1.bf16.msra.mxu0 0
    %256 = vmatprep.subr.bf16.mxu0 0
    %257 = vmatpush1.bf16.msra.mxu0 0
    %258 = vmatprep.mubr.bf16.mxu0 0
    %259 = vmatmul.mubr.bf16.gmra.mrb[0].mxu0 %v224
    %v260 = vpop.f32.mrb[0].mxu0
    %v261 = vadd.f32 %v125, %v260
    %v262 = vpop.f32.mrb[0].mxu0
    %v263 = vadd.f32 %v129, %v262
    %v264 = vpop.f32.mrb[0].mxu0
    %v265 = vpop.f32.mrb[0].mxu0
    %266 = vdwg.mxu0
    %267 = vmatprep.subr.bf16.mxu0 %v193
    %268 = vmatpush1.bf16.msra.mxu0 %v192
    %269 = vmatprep.subr.bf16.mxu0 %v197
    %270 = vmatpush1.bf16.msra.mxu0 %v196
    %271 = vmatprep.subr.bf16.mxu0 %v201
    %272 = vmatpush1.bf16.msra.mxu0 %v200
    %273 = vmatprep.subr.bf16.mxu0 %v205
    %274 = vmatpush1.bf16.msra.mxu0 %v204
    %275 = vmatprep.subr.bf16.mxu0 0
    %276 = vmatpush1.bf16.msra.mxu0 0
    %277 = vmatprep.subr.bf16.mxu0 0
    %278 = vmatpush1.bf16.msra.mxu0 0
    %279 = vmatprep.subr.bf16.mxu0 0
    %280 = vmatpush1.bf16.msra.mxu0 0
    %281 = vmatprep.subr.bf16.mxu0 0
    %282 = vmatpush1.bf16.msra.mxu0 0
    %283 = vmatprep.subr.bf16.mxu0 0
    %284 = vmatpush1.bf16.msra.mxu0 0
    %285 = vmatprep.subr.bf16.mxu0 0
    %286 = vmatpush1.bf16.msra.mxu0 0
    %287 = vmatprep.subr.bf16.mxu0 0
    %288 = vmatpush1.bf16.msra.mxu0 0
    %289 = vmatprep.subr.bf16.mxu0 0
    %290 = vmatpush1.bf16.msra.mxu0 0
    %291 = vmatprep.subr.bf16.mxu0 0
    %292 = vmatpush1.bf16.msra.mxu0 0
    %293 = vmatprep.subr.bf16.mxu0 0
    %294 = vmatpush1.bf16.msra.mxu0 0
    %295 = vmatprep.subr.bf16.mxu0 0
    %296 = vmatpush1.bf16.msra.mxu0 0
    %297 = vmatprep.subr.bf16.mxu0 0
    %298 = vmatpush1.bf16.msra.mxu0 0
    %299 = vmatprep.mubr.bf16.mxu0 0
    %300 = vmatmul.mubr.bf16.gmra.mrb[0].mxu0 %v224
    %v301 = vpop.f32.mrb[0].mxu0
    %v302 = vadd.f32 %v133, %v301
    %v303 = vpop.f32.mrb[0].mxu0
    %v304 = vadd.f32 %v137, %v303
    %v305 = vpop.f32.mrb[0].mxu0
    %v306 = vpop.f32.mrb[0].mxu0
    %307 = vdwg.mxu0
    %v308 = vmax.f32 %v261, 0.0
    %v309 = vmax.f32 %v263, 0.0
    %v310 = vmax.f32 %v302, 0.0
    %v311 = vmax.f32 %v304, 0.0
    %v312 = vpack.c.bf16 %v308, %v308
    %v313 = vpack.c.bf16 %v309, %v309
    %v314 = vpack.c.bf16 %v310, %v310
    %v315 = vpack.c.bf16 %v311, %v311
    %v316 = vld [vmem:[#allocation7] sm:$0xff]
    %v317 = vld [vmem:[#allocation7 + $0x8] sm:$0xff]
    %v318 = vld [vmem:[#allocation7 + $0x10] sm:$0xff]
    %v319 = vld [vmem:[#allocation7 + $0x18] sm:$0xff]
    %v320 = vld [vmem:[#allocation7 + $0x20] sm:$0xff]
    %v321 = vld [vmem:[#allocation7 + $0x28] sm:$0xff]
    %v322 = vld [vmem:[#allocation7 + $0x30] sm:$0xff]
    %v323 = vld [vmem:[#allocation7 + $0x38] sm:$0xff]
    %v324 = vld [vmem:[#allocation7 + $0x40] sm:$0xff]
    %v325 = vld [vmem:[#allocation7 + $0x48] sm:$0xff]
    %v326 = vld [vmem:[#allocation7 + $0x50] sm:$0xff]
    %v327 = vld [vmem:[#allocation7 + $0x58] sm:$0xff]
    %v328 = vld [vmem:[#allocation7 + $0x60] sm:$0xff]
    %v329 = vld [vmem:[#allocation7 + $0x68] sm:$0xff]
    %v330 = vld [vmem:[#allocation7 + $0x70] sm:$0xff]
    %v331 = vld [vmem:[#allocation7 + $0x78] sm:$0xff]
    %v332 = vld [vmem:[#allocation7 + $0x80] sm:$0xff]
    %v333 = vld [vmem:[#allocation7 + $0x88] sm:$0xff]
    %v334 = vld [vmem:[#allocation7 + $0x90] sm:$0xff]
    %v335 = vld [vmem:[#allocation7 + $0x98] sm:$0xff]
    %v336 = vld [vmem:[#allocation7 + $0xa0] sm:$0xff]
    %v337 = vld [vmem:[#allocation7 + $0xa8] sm:$0xff]
    %v338 = vld [vmem:[#allocation7 + $0xb0] sm:$0xff]
    %v339 = vld [vmem:[#allocation7 + $0xb8] sm:$0xff]
    %v340 = vld [vmem:[#allocation7 + $0xc0] sm:$0xff]
    %v341 = vld [vmem:[#allocation7 + $0xc8] sm:$0xff]
    %v342 = vld [vmem:[#allocation7 + $0xd0] sm:$0xff]
    %v343 = vld [vmem:[#allocation7 + $0xd8] sm:$0xff]
    %v344 = vld [vmem:[#allocation7 + $0xe0] sm:$0xff]
    %v345 = vld [vmem:[#allocation7 + $0xe8] sm:$0xff]
    %v346 = vld [vmem:[#allocation7 + $0xf0] sm:$0xff]
    %v347 = vld [vmem:[#allocation7 + $0xf8] sm:$0xff]
    %v348 = vld [vmem:[#allocation7 + $0x100] sm:$0xff]
    %v349 = vld [vmem:[#allocation7 + $0x108] sm:$0xff]
    %v350 = vld [vmem:[#allocation7 + $0x110] sm:$0xff]
    %v351 = vld [vmem:[#allocation7 + $0x118] sm:$0xff]
    %v352 = vld [vmem:[#allocation7 + $0x120] sm:$0xff]
    %v353 = vld [vmem:[#allocation7 + $0x128] sm:$0xff]
    %v354 = vld [vmem:[#allocation7 + $0x130] sm:$0xff]
    %v355 = vld [vmem:[#allocation7 + $0x138] sm:$0xff]
    %v356 = vld [vmem:[#allocation7 + $0x140] sm:$0xff]
    %v357 = vld [vmem:[#allocation7 + $0x148] sm:$0xff]
    %v358 = vld [vmem:[#allocation7 + $0x150] sm:$0xff]
    %v359 = vld [vmem:[#allocation7 + $0x158] sm:$0xff]
    %v360 = vld [vmem:[#allocation7 + $0x160] sm:$0xff]
    %v361 = vld [vmem:[#allocation7 + $0x168] sm:$0xff]
    %v362 = vld [vmem:[#allocation7 + $0x170] sm:$0xff]
    %v363 = vld [vmem:[#allocation7 + $0x178] sm:$0xff]
    %v364 = vld [vmem:[#allocation7 + $0x180] sm:$0xff]
    %v365 = vld [vmem:[#allocation7 + $0x188] sm:$0xff]
    %v366 = vld [vmem:[%s4] sm:$0x3]
    %v368 = vlaneseq
    %v369 = vshrl.u32 %v368, 7
    %v370 = vsub.s32 0, %v369
    %v371 = vrot.slane %v366, %v370
    %v372 = vlaneseq
    %v373 = vshrl.u32 %v372, 7
    %v374 = vsub.s32 1, %v373
    %v375 = vrot.slane %v366, %v374
    %v428 = vunpack.c.l.b16 %v316
    %v429 = vunpack.c.h.b16 %v316
    %v430 = vunpack.c.l.b16 %v317
    %v431 = vunpack.c.h.b16 %v317
    %v432 = vunpack.c.l.b16 %v318
    %v433 = vunpack.c.h.b16 %v318
    %v434 = vunpack.c.l.b16 %v319
    %v435 = vunpack.c.h.b16 %v319
    %v436 = vunpack.c.l.b16 %v320
    %v437 = vunpack.c.h.b16 %v320
    %v438 = vunpack.c.l.b16 %v321
    %v439 = vunpack.c.h.b16 %v321
    %v440 = vunpack.c.l.b16 %v322
    %v441 = vunpack.c.h.b16 %v322
    %v442 = vunpack.c.l.b16 %v323
    %v443 = vunpack.c.h.b16 %v323
    %v444 = vunpack.c.l.b16 %v324
    %v445 = vunpack.c.h.b16 %v324
    %v446 = vunpack.c.l.b16 %v325
    %v447 = vunpack.c.h.b16 %v325
    %v448 = vunpack.c.l.b16 %v326
    %v449 = vunpack.c.h.b16 %v326
    %v450 = vunpack.c.l.b16 %v327
    %v451 = vunpack.c.h.b16 %v327
    %v452 = vunpack.c.l.b16 %v328
    %v453 = vunpack.c.h.b16 %v328
    %v454 = vunpack.c.l.b16 %v329
    %v455 = vunpack.c.h.b16 %v329
    %v456 = vunpack.c.l.b16 %v330
    %v457 = vunpack.c.h.b16 %v330
    %v458 = vunpack.c.l.b16 %v331
    %v459 = vunpack.c.h.b16 %v331
    %v460 = vunpack.c.l.b16 %v332
    %v461 = vunpack.c.h.b16 %v332
    %v462 = vunpack.c.l.b16 %v333
    %v463 = vunpack.c.h.b16 %v333
    %v464 = vunpack.c.l.b16 %v334
    %v465 = vunpack.c.h.b16 %v334
    %v466 = vunpack.c.l.b16 %v335
    %v467 = vunpack.c.h.b16 %v335
    %v468 = vunpack.c.l.b16 %v336
    %v469 = vunpack.c.h.b16 %v336
    %v470 = vunpack.c.l.b16 %v337
    %v471 = vunpack.c.h.b16 %v337
    %v472 = vunpack.c.l.b16 %v338
    %v473 = vunpack.c.h.b16 %v338
    %v474 = vunpack.c.l.b16 %v339
    %v475 = vunpack.c.h.b16 %v339
    %v476 = vunpack.c.l.b16 %v340
    %v477 = vunpack.c.h.b16 %v340
    %v478 = vunpack.c.l.b16 %v341
    %v479 = vunpack.c.h.b16 %v341
    %v480 = vunpack.c.l.b16 %v342
    %v481 = vunpack.c.h.b16 %v342
    %v482 = vunpack.c.l.b16 %v343
    %v483 = vunpack.c.h.b16 %v343
    %v484 = vunpack.c.l.b16 %v344
    %v485 = vunpack.c.h.b16 %v344
    %v486 = vunpack.c.l.b16 %v345
    %v487 = vunpack.c.h.b16 %v345
    %v488 = vunpack.c.l.b16 %v346
    %v489 = vunpack.c.h.b16 %v346
    %v490 = vunpack.c.l.b16 %v347
    %v491 = vunpack.c.h.b16 %v347
    %v492 = vunpack.c.l.b16 %v348
    %v493 = vunpack.c.h.b16 %v348
    %v494 = vunpack.c.l.b16 %v349
    %v495 = vunpack.c.h.b16 %v349
    %v496 = vunpack.c.l.b16 %v350
    %v497 = vunpack.c.h.b16 %v350
    %v498 = vunpack.c.l.b16 %v351
    %v499 = vunpack.c.h.b16 %v351
    %v500 = vunpack.c.l.b16 %v352
    %v501 = vunpack.c.h.b16 %v352
    %v502 = vunpack.c.l.b16 %v353
    %v503 = vunpack.c.h.b16 %v353
    %v504 = vunpack.c.l.b16 %v354
    %v505 = vunpack.c.h.b16 %v354
    %v506 = vunpack.c.l.b16 %v355
    %v507 = vunpack.c.h.b16 %v355
    %v508 = vunpack.c.l.b16 %v356
    %v509 = vunpack.c.h.b16 %v356
    %v510 = vunpack.c.l.b16 %v357
    %v511 = vunpack.c.h.b16 %v357
    %v512 = vunpack.c.l.b16 %v358
    %v513 = vunpack.c.h.b16 %v358
    %v514 = vunpack.c.l.b16 %v359
    %v515 = vunpack.c.h.b16 %v359
    %v516 = vunpack.c.l.b16 %v360
    %v517 = vunpack.c.h.b16 %v360
    %v518 = vunpack.c.l.b16 %v361
    %v519 = vunpack.c.h.b16 %v361
    %v520 = vunpack.c.l.b16 %v362
    %v521 = vunpack.c.h.b16 %v362
    %v522 = vunpack.c.l.b16 %v363
    %v523 = vunpack.c.h.b16 %v363
    %v524 = vunpack.c.l.b16 %v364
    %v525 = vunpack.c.h.b16 %v364
    %v526 = vunpack.c.l.b16 %v365
    %v527 = vunpack.c.h.b16 %v365
    %v528 = vpack.c.b16 %v430, %v428
    %v529 = vpack.c.b16 %v431, %v429
    %v530 = vpack.c.b16 %v434, %v432
    %v531 = vpack.c.b16 %v435, %v433
    %v532 = vpack.c.b16 %v438, %v436
    %v533 = vpack.c.b16 %v439, %v437
    %v534 = vpack.c.b16 %v442, %v440
    %v535 = vpack.c.b16 %v443, %v441
    %v536 = vpack.c.b16 %v446, %v444
    %v537 = vpack.c.b16 %v447, %v445
    %v538 = vpack.c.b16 %v450, %v448
    %v539 = vpack.c.b16 %v451, %v449
    %v540 = vpack.c.b16 %v454, %v452
    %v541 = vpack.c.b16 %v455, %v453
    %v542 = vpack.c.b16 %v458, %v456
    %v543 = vpack.c.b16 %v459, %v457
    %v544 = vpack.c.b16 %v462, %v460
    %v545 = vpack.c.b16 %v463, %v461
    %v546 = vpack.c.b16 %v466, %v464
    %v547 = vpack.c.b16 %v467, %v465
    %v548 = vpack.c.b16 %v470, %v468
    %v549 = vpack.c.b16 %v471, %v469
    %v550 = vpack.c.b16 %v474, %v472
    %v551 = vpack.c.b16 %v475, %v473
    %v552 = vpack.c.b16 %v478, %v476
    %v553 = vpack.c.b16 %v479, %v477
    %v554 = vpack.c.b16 %v482, %v480
    %v555 = vpack.c.b16 %v483, %v481
    %v556 = vpack.c.b16 %v486, %v484
    %v557 = vpack.c.b16 %v487, %v485
    %v558 = vpack.c.b16 %v490, %v488
    %v559 = vpack.c.b16 %v491, %v489
    %v560 = vpack.c.b16 %v494, %v492
    %v561 = vpack.c.b16 %v495, %v493
    %v562 = vpack.c.b16 %v498, %v496
    %v563 = vpack.c.b16 %v499, %v497
    %v564 = vpack.c.b16 %v502, %v500
    %v565 = vpack.c.b16 %v503, %v501
    %v566 = vpack.c.b16 %v506, %v504
    %v567 = vpack.c.b16 %v507, %v505
    %v568 = vpack.c.b16 %v510, %v508
    %v569 = vpack.c.b16 %v511, %v509
    %v570 = vpack.c.b16 %v514, %v512
    %v571 = vpack.c.b16 %v515, %v513
    %v572 = vpack.c.b16 %v518, %v516
    %v573 = vpack.c.b16 %v519, %v517
    %v574 = vpack.c.b16 %v522, %v520
    %v575 = vpack.c.b16 %v523, %v521
    %v576 = vpack.c.b16 %v526, %v524
    %v577 = vpack.c.b16 %v527, %v525
    %vm628 = vcmask 130048
    %v630 = vsel %vm628, %v315, 0
    %632 = vmatprep.subr.bf16.mxu0 %v529
    %633 = vmatpush1.bf16.msra.mxu0 %v528
    %634 = vmatprep.subr.bf16.mxu0 %v531
    %635 = vmatpush1.bf16.msra.mxu0 %v530
    %636 = vmatprep.subr.bf16.mxu0 %v533
    %637 = vmatpush1.bf16.msra.mxu0 %v532
    %638 = vmatprep.subr.bf16.mxu0 %v535
    %639 = vmatpush1.bf16.msra.mxu0 %v534
    %640 = vmatprep.subr.bf16.mxu0 %v537
    %641 = vmatpush1.bf16.msra.mxu0 %v536
    %642 = vmatprep.subr.bf16.mxu0 %v539
    %643 = vmatpush1.bf16.msra.mxu0 %v538
    %644 = vmatprep.subr.bf16.mxu0 %v541
    %645 = vmatpush1.bf16.msra.mxu0 %v540
    %646 = vmatprep.subr.bf16.mxu0 %v543
    %647 = vmatpush1.bf16.msra.mxu0 %v542
    %648 = vmatprep.subr.bf16.mxu0 %v545
    %649 = vmatpush1.bf16.msra.mxu0 %v544
    %650 = vmatprep.subr.bf16.mxu0 %v547
    %651 = vmatpush1.bf16.msra.mxu0 %v546
    %652 = vmatprep.subr.bf16.mxu0 %v549
    %653 = vmatpush1.bf16.msra.mxu0 %v548
    %654 = vmatprep.subr.bf16.mxu0 %v551
    %655 = vmatpush1.bf16.msra.mxu0 %v550
    %656 = vmatprep.subr.bf16.mxu0 %v553
    %657 = vmatpush1.bf16.msra.mxu0 %v552
    %658 = vmatprep.subr.bf16.mxu0 %v555
    %659 = vmatpush1.bf16.msra.mxu0 %v554
    %660 = vmatprep.subr.bf16.mxu0 %v557
    %661 = vmatpush1.bf16.msra.mxu0 %v556
    %662 = vmatprep.subr.bf16.mxu0 %v559
    %663 = vmatpush1.bf16.msra.mxu0 %v558
    %664 = vmatprep.mubr.bf16.mxu0 %v313
    %665 = vmatmul.mubr.bf16.gmra.mrb[0].mxu0 %v312
    %v666 = vpop.f32.mrb[0].mxu0
    %v667 = vadd.f32 %v371, %v666
    %v668 = vpop.f32.mrb[0].mxu0
    %v669 = vadd.f32 %v375, %v668
    %v670 = vpop.f32.mrb[0].mxu0
    %v671 = vpop.f32.mrb[0].mxu0
    %672 = vdwg.mxu0
    %673 = vmatprep.subr.bf16.mxu0 %v561
    %674 = vmatpush1.bf16.msra.mxu0 %v560
    %675 = vmatprep.subr.bf16.mxu0 %v563
    %676 = vmatpush1.bf16.msra.mxu0 %v562
    %677 = vmatprep.subr.bf16.mxu0 %v565
    %678 = vmatpush1.bf16.msra.mxu0 %v564
    %679 = vmatprep.subr.bf16.mxu0 %v567
    %680 = vmatpush1.bf16.msra.mxu0 %v566
    %681 = vmatprep.subr.bf16.mxu0 %v569
    %682 = vmatpush1.bf16.msra.mxu0 %v568
    %683 = vmatprep.subr.bf16.mxu0 %v571
    %684 = vmatpush1.bf16.msra.mxu0 %v570
    %685 = vmatprep.subr.bf16.mxu0 %v573
    %686 = vmatpush1.bf16.msra.mxu0 %v572
    %687 = vmatprep.subr.bf16.mxu0 %v575
    %688 = vmatpush1.bf16.msra.mxu0 %v574
    %689 = vmatprep.subr.bf16.mxu0 %v577
    %690 = vmatpush1.bf16.msra.mxu0 %v576
    %691 = vmatprep.subr.bf16.mxu0 0
    %692 = vmatpush1.bf16.msra.mxu0 0
    %693 = vmatprep.subr.bf16.mxu0 0
    %694 = vmatpush1.bf16.msra.mxu0 0
    %695 = vmatprep.subr.bf16.mxu0 0
    %696 = vmatpush1.bf16.msra.mxu0 0
    %697 = vmatprep.subr.bf16.mxu0 0
    %698 = vmatpush1.bf16.msra.mxu0 0
    %699 = vmatprep.subr.bf16.mxu0 0
    %700 = vmatpush1.bf16.msra.mxu0 0
    %701 = vmatprep.subr.bf16.mxu0 0
    %702 = vmatpush1.bf16.msra.mxu0 0
    %703 = vmatprep.subr.bf16.mxu0 0
    %704 = vmatpush1.bf16.msra.mxu0 0
    %705 = vmatprep.mubr.bf16.mxu0 %v630
    %706 = vmatmul.mubr.bf16.gmra.mrb[0].mxu0 %v314
    %v707 = vpop.f32.mrb[0].mxu0
    %v708 = vadd.f32 %v667, %v707
    %v709 = vpop.f32.mrb[0].mxu0
    %v710 = vadd.f32 %v669, %v709
    %v711 = vpop.f32.mrb[0].mxu0
    %v712 = vpop.f32.mrb[0].mxu0
    %713 = vdwg.mxu0
    %v714 = vmax.f32 %v708, 0.0
    %v715 = vmax.f32 %v710, 0.0
    %v716 = vpack.c.bf16 %v714, %v714
    %v717 = vpack.c.bf16 %v715, %v715
    %v718 = vld [vmem:[%s5] sm:$0xf]
    %v719 = vld [vmem:[%s5 + $0x4] sm:$0xf]
    %v720 = vld [vmem:[%s5 + $0x8] sm:$0xf]
    %v721 = vld [vmem:[%s5 + $0xc] sm:$0xf]
    %v722 = vld [vmem:[%s5 + $0x10] sm:$0xf]
    %v723 = vld [vmem:[%s5 + $0x14] sm:$0xf]
    %v724 = vld [vmem:[%s5 + $0x18] sm:$0xf]
    %v725 = vld [vmem:[%s5 + $0x1c] sm:$0xf]
    %v726 = vld [vmem:[%s5 + $0x20] sm:$0xf]
    %v727 = vld [vmem:[%s5 + $0x24] sm:$0xf]
    %v728 = vld [vmem:[%s5 + $0x28] sm:$0xf]
    %v729 = vld [vmem:[%s5 + $0x2c] sm:$0xf]
    %v730 = vld [vmem:[%s5 + $0x30] sm:$0xf]
    %v731 = vld [vmem:[%s5 + $0x34] sm:$0xf]
    %v732 = vld [vmem:[%s5 + $0x38] sm:$0xf]
    %v733 = vld [vmem:[%s5 + $0x3c] sm:$0xf]
    %v734 = vld [vmem:[%s5 + $0x40] sm:$0xf]
    %v735 = vld [vmem:[%s5 + $0x44] sm:$0xf]
    %v736 = vld [vmem:[%s5 + $0x48] sm:$0xf]
    %v737 = vld [vmem:[%s5 + $0x4c] sm:$0xf]
    %v738 = vld [vmem:[%s5 + $0x50] sm:$0xf]
    %v739 = vld [vmem:[%s5 + $0x54] sm:$0xf]
    %v740 = vld [vmem:[%s5 + $0x58] sm:$0xf]
    %v741 = vld [vmem:[%s5 + $0x5c] sm:$0xf]
    %v742 = vld [vmem:[%s5 + $0x60] sm:$0xf]
    %v743 = vld [vmem:[#allocation8] sm:$0x1]
    %v745 = vlaneseq
    %v746 = vshrl.u32 %v745, 7
    %v747 = vsub.s32 0, %v746
    %v748 = vrot.slane %v743, %v747
    %v775 = vunpack.c.l.b16 %v718
    %v776 = vunpack.c.l.b16 %v719
    %v777 = vunpack.c.l.b16 %v720
    %v778 = vunpack.c.l.b16 %v721
    %v779 = vunpack.c.l.b16 %v722
    %v780 = vunpack.c.l.b16 %v723
    %v781 = vunpack.c.l.b16 %v724
    %v782 = vunpack.c.l.b16 %v725
    %v783 = vunpack.c.l.b16 %v726
    %v784 = vunpack.c.l.b16 %v727
    %v785 = vunpack.c.l.b16 %v728
    %v786 = vunpack.c.l.b16 %v729
    %v787 = vunpack.c.l.b16 %v730
    %v788 = vunpack.c.l.b16 %v731
    %v789 = vunpack.c.l.b16 %v732
    %v790 = vunpack.c.l.b16 %v733
    %v791 = vunpack.c.l.b16 %v734
    %v792 = vunpack.c.l.b16 %v735
    %v793 = vunpack.c.l.b16 %v736
    %v794 = vunpack.c.l.b16 %v737
    %v795 = vunpack.c.l.b16 %v738
    %v796 = vunpack.c.l.b16 %v739
    %v797 = vunpack.c.l.b16 %v740
    %v798 = vunpack.c.l.b16 %v741
    %v799 = vunpack.c.l.b16 %v742
    %v800 = vpack.c.b16 %v776, %v775
    %v801 = vpack.c.b16 %v778, %v777
    %v802 = vpack.c.b16 %v780, %v779
    %v803 = vpack.c.b16 %v782, %v781
    %v804 = vpack.c.b16 %v784, %v783
    %v805 = vpack.c.b16 %v786, %v785
    %v806 = vpack.c.b16 %v788, %v787
    %v807 = vpack.c.b16 %v790, %v789
    %v808 = vpack.c.b16 %v792, %v791
    %v809 = vpack.c.b16 %v794, %v793
    %v810 = vpack.c.b16 %v796, %v795
    %v811 = vpack.c.b16 %v798, %v797
    %v812 = vpack.c.b16 %v799, %v799
    %vm825 = vcmask 588800
    %v827 = vsel %vm825, %v717, 0
    %vm829 = vcmask 1043456
    %v831 = vsel %vm829, %v812, 0
    %833 = vmatprep.subr.bf16.mxu0 0
    %834 = vmatpush1.bf16.msra.mxu0 %v800
    %835 = vmatprep.subr.bf16.mxu0 0
    %836 = vmatpush1.bf16.msra.mxu0 %v801
    %837 = vmatprep.subr.bf16.mxu0 0
    %838 = vmatpush1.bf16.msra.mxu0 %v802
    %839 = vmatprep.subr.bf16.mxu0 0
    %840 = vmatpush1.bf16.msra.mxu0 %v803
    %841 = vmatprep.subr.bf16.mxu0 0
    %842 = vmatpush1.bf16.msra.mxu0 %v804
    %843 = vmatprep.subr.bf16.mxu0 0
    %844 = vmatpush1.bf16.msra.mxu0 %v805
    %845 = vmatprep.subr.bf16.mxu0 0
    %846 = vmatpush1.bf16.msra.mxu0 %v806
    %847 = vmatprep.subr.bf16.mxu0 0
    %848 = vmatpush1.bf16.msra.mxu0 %v807
    %849 = vmatprep.subr.bf16.mxu0 0
    %850 = vmatpush1.bf16.msra.mxu0 %v808
    %851 = vmatprep.subr.bf16.mxu0 0
    %852 = vmatpush1.bf16.msra.mxu0 %v809
    %853 = vmatprep.subr.bf16.mxu0 0
    %854 = vmatpush1.bf16.msra.mxu0 %v810
    %855 = vmatprep.subr.bf16.mxu0 0
    %856 = vmatpush1.bf16.msra.mxu0 %v811
    %857 = vmatprep.subr.bf16.mxu0 0
    %858 = vmatpush1.bf16.msra.mxu0 %v831
    %859 = vmatprep.subr.bf16.mxu0 0
    %860 = vmatpush1.bf16.msra.mxu0 0
    %861 = vmatprep.subr.bf16.mxu0 0
    %862 = vmatpush1.bf16.msra.mxu0 0
    %863 = vmatprep.subr.bf16.mxu0 0
    %864 = vmatpush1.bf16.msra.mxu0 0
    %865 = vmatprep.mubr.bf16.mxu0 %v827
    %866 = vmatmul.mubr.bf16.gmra.mrb[0].mxu0 %v716
    %v867 = vpop.f32.mrb[0].mxu0
    %v868 = vadd.f32 %v748, %v867
    %v869 = vpop.f32.mrb[0].mxu0
    %v870 = vpop.f32.mrb[0].mxu0
    %v871 = vpop.f32.mrb[0].mxu0
    %872 = vdwg.mxu0
    %v873 = vmax.f32 %v868, 0.0
    %v874 = vpack.c.bf16 %v873, %v873
    %v875 = vld [vmem:[%s7] sm:$0xf]
    %v876 = vld [vmem:[%s7 + $0x4] sm:$0xf]
    %v877 = vld [vmem:[%s7 + $0x8] sm:$0xf]
    %v878 = vld [vmem:[%s7 + $0xc] sm:$0xf]
    %v879 = vld [vmem:[%s7 + $0x10] sm:$0xf]
    %v880 = vld [vmem:[%s7 + $0x14] sm:$0xf]
    %v881 = vld [vmem:[%s7 + $0x18] sm:$0xf]
    %v882 = vld [vmem:[%s7 + $0x1c] sm:$0xf]
    %v883 = vld [vmem:[%s7 + $0x20] sm:$0xf]
    %v884 = vld [vmem:[%s7 + $0x24] sm:$0xf]
    %v885 = vld [vmem:[%s7 + $0x28] sm:$0xf]
    %v886 = vld [vmem:[%s7 + $0x2c] sm:$0xf]
    %v887 = vld [vmem:[%s7 + $0x30] sm:$0x3]
    %v888 = vld [vmem:[#allocation10] sm:$0x1]
    %v890 = vlaneseq
    %v891 = vshrl.u32 %v890, 7
    %v892 = vsub.s32 0, %v891
    %v893 = vrot.slane %v888, %v892
    %v908 = vunpack.c.l.b16 %v875
    %v909 = vunpack.c.l.b16 %v876
    %v910 = vunpack.c.l.b16 %v877
    %v911 = vunpack.c.l.b16 %v878
    %v912 = vunpack.c.l.b16 %v879
    %v913 = vunpack.c.l.b16 %v880
    %v914 = vunpack.c.l.b16 %v881
    %v915 = vunpack.c.l.b16 %v882
    %v916 = vunpack.c.l.b16 %v883
    %v917 = vunpack.c.l.b16 %v884
    %v918 = vunpack.c.l.b16 %v885
    %v919 = vunpack.c.l.b16 %v886
    %v920 = vunpack.c.l.b16 %v887
    %v921 = vpack.c.b16 %v909, %v908
    %v922 = vpack.c.b16 %v911, %v910
    %v923 = vpack.c.b16 %v913, %v912
    %v924 = vpack.c.b16 %v915, %v914
    %v925 = vpack.c.b16 %v917, %v916
    %v926 = vpack.c.b16 %v919, %v918
    %v927 = vpack.c.b16 %v920, %v920
    %vm934 = vcmask 818176
    %v936 = vsel %vm934, %v874, 0
    %vm938 = vcmask 1041408
    %v940 = vsel %vm938, %v927, 0
    %942 = vmatprep.subr.bf16.mxu0 0
    %943 = vmatpush1.bf16.msra.mxu0 %v921
    %944 = vmatprep.subr.bf16.mxu0 0
    %945 = vmatpush1.bf16.msra.mxu0 %v922
    %946 = vmatprep.subr.bf16.mxu0 0
    %947 = vmatpush1.bf16.msra.mxu0 %v923
    %948 = vmatprep.subr.bf16.mxu0 0
    %949 = vmatpush1.bf16.msra.mxu0 %v924
    %950 = vmatprep.subr.bf16.mxu0 0
    %951 = vmatpush1.bf16.msra.mxu0 %v925
    %952 = vmatprep.subr.bf16.mxu0 0
    %953 = vmatpush1.bf16.msra.mxu0 %v926
    %954 = vmatprep.subr.bf16.mxu0 0
    %955 = vmatpush1.bf16.msra.mxu0 %v940
    %956 = vmatprep.subr.bf16.mxu0 0
    %957 = vmatpush1.bf16.msra.mxu0 0
    %958 = vmatprep.subr.bf16.mxu0 0
    %959 = vmatpush1.bf16.msra.mxu0 0
    %960 = vmatprep.subr.bf16.mxu0 0
    %961 = vmatpush1.bf16.msra.mxu0 0
    %962 = vmatprep.subr.bf16.mxu0 0
    %963 = vmatpush1.bf16.msra.mxu0 0
    %964 = vmatprep.subr.bf16.mxu0 0
    %965 = vmatpush1.bf16.msra.mxu0 0
    %966 = vmatprep.subr.bf16.mxu0 0
    %967 = vmatpush1.bf16.msra.mxu0 0
    %968 = vmatprep.subr.bf16.mxu0 0
    %969 = vmatpush1.bf16.msra.mxu0 0
    %970 = vmatprep.subr.bf16.mxu0 0
    %971 = vmatpush1.bf16.msra.mxu0 0
    %972 = vmatprep.subr.bf16.mxu0 0
    %973 = vmatpush1.bf16.msra.mxu0 0
    %974 = vmatprep.mubr.bf16.mxu0 0
    %975 = vmatmul.mubr.bf16.gmra.mrb[0].mxu0 %v936
    %v976 = vpop.f32.mrb[0].mxu0
    %v977 = vadd.f32 %v893, %v976
    %v978 = vpop.f32.mrb[0].mxu0
    %v979 = vpop.f32.mrb[0].mxu0
    %v980 = vpop.f32.mrb[0].mxu0
    %981 = vdwg.mxu0
    %v982 = vmax.f32 %v977, 0.0
    %v983 = vpack.c.bf16 %v982, %v982
    %v984 = vld [vmem:[%s9] sm:$0xf]
    %v985 = vld [vmem:[%s9 + $0x4] sm:$0xf]
    %v986 = vld [vmem:[%s9 + $0x8] sm:$0xf]
    %v987 = vld [vmem:[%s9 + $0xc] sm:$0xf]
    %v988 = vld [vmem:[%s9 + $0x10] sm:$0xf]
    %v989 = vld [vmem:[%s9 + $0x14] sm:$0xf]
    %v990 = vld [vmem:[%s9 + $0x18] sm:$0x1]
    %v991 = vld [vmem:[%s10] sm:$0x1]
    %v993 = vlaneseq
    %v994 = vshrl.u32 %v993, 7
    %v995 = vsub.s32 0, %v994
    %v996 = vrot.slane %v991, %v995
    %v1005 = vunpack.c.l.b16 %v984
    %v1006 = vunpack.c.l.b16 %v985
    %v1007 = vunpack.c.l.b16 %v986
    %v1008 = vunpack.c.l.b16 %v987
    %v1009 = vunpack.c.l.b16 %v988
    %v1010 = vunpack.c.l.b16 %v989
    %v1011 = vunpack.c.l.b16 %v990
    %v1012 = vpack.c.b16 %v1006, %v1005
    %v1013 = vpack.c.b16 %v1008, %v1007
    %v1014 = vpack.c.b16 %v1010, %v1009
    %v1015 = vpack.c.b16 %v1011, %v1011
    %vm1019 = vcmask 408576
    %v1021 = vsel %vm1019, %v983, 0
    %vm1023 = vcmask 1040384
    %v1025 = vsel %vm1023, %v1015, 0
    %1027 = vmatprep.subr.bf16.mxu0 0
    %1028 = vmatpush1.bf16.msra.mxu0 %v1012
    %1029 = vmatprep.subr.bf16.mxu0 0
    %1030 = vmatpush1.bf16.msra.mxu0 %v1013
    %1031 = vmatprep.subr.bf16.mxu0 0
    %1032 = vmatpush1.bf16.msra.mxu0 %v1014
    %1033 = vmatprep.subr.bf16.mxu0 0
    %1034 = vmatpush1.bf16.msra.mxu0 %v1025
    %1035 = vmatprep.subr.bf16.mxu0 0
    %1036 = vmatpush1.bf16.msra.mxu0 0
    %1037 = vmatprep.subr.bf16.mxu0 0
    %1038 = vmatpush1.bf16.msra.mxu0 0
    %1039 = vmatprep.subr.bf16.mxu0 0
    %1040 = vmatpush1.bf16.msra.mxu0 0
    %1041 = vmatprep.subr.bf16.mxu0 0
    %1042 = vmatpush1.bf16.msra.mxu0 0
    %1043 = vmatprep.subr.bf16.mxu0 0
    %1044 = vmatpush1.bf16.msra.mxu0 0
    %1045 = vmatprep.subr.bf16.mxu0 0
    %1046 = vmatpush1.bf16.msra.mxu0 0
    %1047 = vmatprep.subr.bf16.mxu0 0
    %1048 = vmatpush1.bf16.msra.mxu0 0
    %1049 = vmatprep.subr.bf16.mxu0 0
    %1050 = vmatpush1.bf16.msra.mxu0 0
    %1051 = vmatprep.subr.bf16.mxu0 0
    %1052 = vmatpush1.bf16.msra.mxu0 0
    %1053 = vmatprep.subr.bf16.mxu0 0
    %1054 = vmatpush1.bf16.msra.mxu0 0
    %1055 = vmatprep.subr.bf16.mxu0 0
    %1056 = vmatpush1.bf16.msra.mxu0 0
    %1057 = vmatprep.subr.bf16.mxu0 0
    %1058 = vmatpush1.bf16.msra.mxu0 0
    %1059 = vmatprep.mubr.bf16.mxu0 0
    %1060 = vmatmul.mubr.bf16.gmra.mrb[0].mxu0 %v1021
    %v1061 = vpop.f32.mrb[0].mxu0
    %v1062 = vadd.f32 %v996, %v1061
    %v1063 = vpop.f32.mrb[0].mxu0
    %v1064 = vpop.f32.mrb[0].mxu0
    %v1065 = vpop.f32.mrb[0].mxu0
    %1066 = vdwg.mxu0
    %vm1067 = vcmask 80896
    %v1068 = vsel %vm1067, %v1062, -inf
    %1069 = vmax.xlane.f32.xlu0 %v1068
    %v1070 = vpop.xlane.xlu0 %1069
    %v1071 = vsub.f32 %v1062, %v1070
    %v1072 = vmul.f32 %v1071, 1.442695
    %v1073 = vpow.pop %v1072
    %v1074 = vsel %vm1067, %v1073, 0.0
    %1075 = vadd.xlane.f32.xlu0 %v1074
    %v1076 = vpop.xlane.xlu0 %1075
    %v1077 = vlog2.pop %v1076
    %v1078 = vmul.f32 %v1077, 0.6931472
    %v1079 = vsub.f32 %v1071, %v1078
    %1080 = vst.msk [vmem:[#allocation11] sm:$0xff] %vm1067, %v1079
    // Predicated region
    $region66: #{tpu_custom_call.1} parent=1 // pred_check
      _
    $region67: #{tpu_custom_call.1} parent=1 // pred_check_branch
      %1082 = sbr.rel (0) target = $region69
    $region68: #{tpu_custom_call.1} parent=1 // pred_region
      %s1084 = ssub.s32 128, 128
      %1085 = vsyncadd [#allocation4], %s1084
      %s1087 = sshll.u32 [#allocation11], 4
      %s1088 = int_to_ptr.vmem [resolvable:$true] %s1087
      %1090 = dma.vmem_to_hbm [thread:$0]  %s1088, 128, %s11, [#allocation4]
    $region69: #{tpu_custom_call.1} parent=1 // pred_fallthru
      _
    // Predicated region
    $region70: #{tpu_custom_call.1} parent=1 // pred_check
      _
    $region71: #{tpu_custom_call.1} parent=1 // pred_check_branch
      %1092 = sbr.rel (0) target = $region73
    $region72: #{tpu_custom_call.1} parent=1 // pred_region
      %1093 = dma.done [#allocation4], 128
    $region73: #{tpu_custom_call.1} parent=1 // pred_fallthru
      _
    %1094 = vsyncpa [#allocation3], 1
    %1095 = vsyncpa [#allocation6], 1
    %1096 = vsyncpa [#allocation9], 1
    %1097 = vsyncpa [#allocation4], 1

</llo_original>
